<compile_context>
chip_gen: v7x
topology: tpu7x:2x2x1
jax: 0.10.0
libtpu: 0.0.40
codegen_flags: <defaults>
</compile_context>

<pallas_src>
import functools

import jax
import jax.numpy as jnp
from jax.experimental import pallas as pl
from jax.experimental.pallas import tpu as pltpu


def diffpool_kernel(src_ref,   # VMEM (M, TB, D) stacked src experts (batch tile)
                    trg_ref,   # VMEM (M, TB, D) stacked trg experts (batch tile)
                    ws_ref,    # VMEM (D, D)  folded weight  ((Wsrc - Wdiff).T / M)
                    wt_ref,    # VMEM (D, D)  folded weight  ((Wdiff + Wtrg).T / M)
                    b_ref,     # VMEM (1, D)  bias
                    out_ref):  # VMEM (TB, D)
    # Mean over modalities: leading-axis sum (cheap VPU adds across vregs).
    # The 1/M scale is pre-folded into ws/wt, so no per-tile multiply here.
    src = jnp.sum(src_ref[...], axis=0)   # (TB, D)
    trg = jnp.sum(trg_ref[...], axis=0)   # (TB, D)

    # concat([src, diff, trg]) @ W.T + b, with diff folded into the weights:
    # two accumulating MXU matmuls with f32 accumulation, no lane-axis concat.
    acc = jnp.dot(src, ws_ref[...], preferred_element_type=jnp.float32)
    acc = acc + jnp.dot(trg, wt_ref[...], preferred_element_type=jnp.float32)
    out_ref[...] = (acc + b_ref[...]).astype(out_ref.dtype)


def diffpool(src_experts, trg_experts, weight, bias, modalities, *, tb=256):
    """weight: (D, 3D) PyTorch-layout Linear weight; bias: (D,)."""
    # Glue: dict gather + stack stays in plain JAX.
    src = jnp.stack([src_experts[m] for m in modalities], axis=0)  # (M, B, D)
    trg = jnp.stack([trg_experts[m] for m in modalities], axis=0)  # (M, B, D)
    M, B, D = src.shape
    inv_m = 1.0 / M

    # Split the (D, 3D) weight into per-segment blocks and fold diff + mean:
    #   x @ W.T = src@Ws.T + (trg - src)@Wd.T + trg@Wt.T
    #           = src@(Ws - Wd).T + trg@(Wd + Wt).T
    # with the 1/M modality-mean scale absorbed into the folded weights.
    w_src = weight[:, 0 * D:1 * D]
    w_diff = weight[:, 1 * D:2 * D]
    w_trg = weight[:, 2 * D:3 * D]
    ws = jnp.transpose(w_src - w_diff) * inv_m   # (D, D), (in, out) layout
    wt = jnp.transpose(w_diff + w_trg) * inv_m   # (D, D)
    b = bias.reshape(1, D)

    # Batch tile: largest multiple of 8 <= tb (and <= B); tiny B uses the full
    # batch (full-extent block dims are exempt from the (8,128) rule).
    tb = max(1, min(tb, B))
    if B >= 8:
        tb = max(8, tb - (tb % 8))
    else:
        tb = B
    grid = (pl.cdiv(B, tb),)

    # VMEM budget: double-buffered expert tiles + output tile + resident weights.
    f32 = 4
    vmem_bytes = (2 * (2 * M * tb * D)       # src + trg tiles, double-buffered
                  + 2 * (tb * D)             # output tile, double-buffered
                  + (2 * D * D + D)) * f32   # resident ws/wt/bias
    vmem_limit = int(min(max(2 * vmem_bytes, 4 << 20), 64 << 20))

    cost = pl.CostEstimate(
        flops=4 * B * D * D + 2 * (M - 1) * B * D,   # 2 matmuls + modality sums
        transcendentals=0,
        bytes_accessed=(2 * M * B * D + B * D + 2 * D * D + D) * f32,
    )

    # TODO(synk): for D not a multiple of 128 the output store is a masked
    # partial vst; production sizes should pad D to a lane-dense multiple of 128.
    return pl.pallas_call(
        diffpool_kernel,
        out_shape=jax.ShapeDtypeStruct((B, D), jnp.float32),
        grid=grid,
        in_specs=[
            pl.BlockSpec((M, tb, D), lambda i: (0, i, 0)),   # src tile
            pl.BlockSpec((M, tb, D), lambda i: (0, i, 0)),   # trg tile
            pl.BlockSpec((D, D), lambda i: (0, 0)),          # ws (resident)
            pl.BlockSpec((D, D), lambda i: (0, 0)),          # wt (resident)
            pl.BlockSpec((1, D), lambda i: (0, 0)),          # bias (resident)
        ],
        out_specs=pl.BlockSpec((tb, D), lambda i: (i, 0)),
        compiler_params=pltpu.CompilerParams(
            dimension_semantics=("parallel",),               # megacore on v7x
            vmem_limit_bytes=vmem_limit,
        ),
        cost_estimate=cost,
    )(src, trg, ws, wt, b)


def init_params(key, embed_dim):
    D = embed_dim
    k_w, k_b = jax.random.split(key)
    bound = 1.0 / jnp.sqrt(3.0 * D)
    return {
        # PyTorch nn.Linear(3D, D) layout: weight (out, in) = (D, 3D), bias (D,)
        "weight": jax.random.uniform(k_w, (D, 3 * D), jnp.float32, -bound, bound),
        "bias": jax.random.uniform(k_b, (D,), jnp.float32, -bound, bound),
    }


def reference_forward(src_experts, trg_experts, params, modalities):
    """Plain-JAX reference matching the PyTorch module exactly."""
    src = jnp.mean(jnp.stack([src_experts[m] for m in modalities], 1), axis=1)
    trg = jnp.mean(jnp.stack([trg_experts[m] for m in modalities], 1), axis=1)
    diff = trg - src
    x = jnp.concatenate([src, diff, trg], axis=-1)
    return x @ params["weight"].T + params["bias"]


if __name__ == "__main__":
    key = jax.random.PRNGKey(0)
    B, D = 16, 32
    modalities = ["audio", "video", "text"]

    k_param, k_data = jax.random.split(key)
    params = init_params(k_param, D)

    dkeys = jax.random.split(k_data, 2 * len(modalities))
    src_experts = {m: jax.random.normal(dkeys[i], (B, D), jnp.float32)
                   for i, m in enumerate(modalities)}
    trg_experts = {m: jax.random.normal(dkeys[len(modalities) + i], (B, D), jnp.float32)
                   for i, m in enumerate(modalities)}

    # tb=8 forces a 2-step grid so the batch tiling / pipelining path is exercised.
    run = jax.jit(functools.partial(diffpool, modalities=modalities, tb=8))
    out = run(src_experts, trg_experts, params["weight"], params["bias"])
    out = jax.block_until_ready(out)

    ref = reference_forward(src_experts, trg_experts, params, modalities)
    assert out.shape == (B, D)
    assert jnp.allclose(out, ref, atol=1e-4, rtol=1e-4), (
        float(jnp.max(jnp.abs(out - ref))))

    print("KERNEL_OK")
</pallas_src>

<mosaic_0001>
module attributes {stable_mosaic.version = 11 : i64} {
  func.func @diffpool_kernel(%arg0: i32, %arg1: memref<3x8x32xf32, #tpu.memory_space<vmem>>, %arg2: memref<3x8x32xf32, #tpu.memory_space<vmem>>, %arg3: memref<32x32xf32, #tpu.memory_space<vmem>>, %arg4: memref<32x32xf32, #tpu.memory_space<vmem>>, %arg5: memref<1x32xf32, #tpu.memory_space<vmem>>, %arg6: memref<8x32xf32, #tpu.memory_space<vmem>>) attributes {dimension_semantics = [#tpu.dimension_semantics<parallel>], iteration_bounds = array<i64: 2>, scalar_prefetch = 0 : i64, scratch_operands = 0 : i64, tpu.core_type = #tpu.core_type<tc>, window_params = [{transform_indices = @transform_0, window_bounds = array<i64: 3, 8, 32>}, {transform_indices = @transform_1, window_bounds = array<i64: 3, 8, 32>}, {pipeline_mode = #tpu.pipeline_mode<synchronous>, transform_indices = @transform_2, window_bounds = array<i64: 32, 32>}, {pipeline_mode = #tpu.pipeline_mode<synchronous>, transform_indices = @transform_3, window_bounds = array<i64: 32, 32>}, {pipeline_mode = #tpu.pipeline_mode<synchronous>, transform_indices = @transform_4, window_bounds = array<i64: 1, 32>}, {transform_indices = @transform_5, window_bounds = array<i64: 8, 32>}]} {
    %c0 = arith.constant 0 : index
    %c0_0 = arith.constant 0 : index
    %c0_1 = arith.constant 0 : index
    %0 = vector.load %arg1[%c0, %c0_0, %c0_1] : memref<3x8x32xf32, #tpu.memory_space<vmem>>, vector<3x8x32xf32>
    %cst = arith.constant dense<0.000000e+00> : vector<8x32xf32>
    %1 = vector.multi_reduction <add>, %0, %cst [0] : vector<3x8x32xf32> to vector<8x32xf32>
    %c0_2 = arith.constant 0 : index
    %c0_3 = arith.constant 0 : index
    %c0_4 = arith.constant 0 : index
    %2 = vector.load %arg2[%c0_2, %c0_3, %c0_4] : memref<3x8x32xf32, #tpu.memory_space<vmem>>, vector<3x8x32xf32>
    %cst_5 = arith.constant dense<0.000000e+00> : vector<8x32xf32>
    %3 = vector.multi_reduction <add>, %2, %cst_5 [0] : vector<3x8x32xf32> to vector<8x32xf32>
    %c0_6 = arith.constant 0 : index
    %c0_7 = arith.constant 0 : index
    %4 = vector.load %arg3[%c0_6, %c0_7] : memref<32x32xf32, #tpu.memory_space<vmem>>, vector<32x32xf32>
    %cst_8 = arith.constant dense<0.000000e+00> : vector<8x32xf32>
    %5 = tpu.matmul %1, %4, %cst_8 {dimension_numbers = #tpu.dot_dimension_numbers<[1], [0], [0], [1], [0, 0, 1, 1], [], []>} : vector<8x32xf32>, vector<32x32xf32>, vector<8x32xf32> -> vector<8x32xf32>
    %c0_9 = arith.constant 0 : index
    %c0_10 = arith.constant 0 : index
    %6 = vector.load %arg4[%c0_9, %c0_10] : memref<32x32xf32, #tpu.memory_space<vmem>>, vector<32x32xf32>
    %cst_11 = arith.constant dense<0.000000e+00> : vector<8x32xf32>
    %7 = tpu.matmul %3, %6, %cst_11 {dimension_numbers = #tpu.dot_dimension_numbers<[1], [0], [0], [1], [0, 0, 1, 1], [], []>} : vector<8x32xf32>, vector<32x32xf32>, vector<8x32xf32> -> vector<8x32xf32>
    %8 = arith.addf %5, %7 : vector<8x32xf32>
    %c0_12 = arith.constant 0 : index
    %c0_13 = arith.constant 0 : index
    %9 = vector.load %arg5[%c0_12, %c0_13] : memref<1x32xf32, #tpu.memory_space<vmem>>, vector<1x32xf32>
    %10 = vector.broadcast %9 : vector<1x32xf32> to vector<8x32xf32>
    %11 = arith.addf %8, %10 : vector<8x32xf32>
    %c0_14 = arith.constant 0 : index
    %c0_15 = arith.constant 0 : index
    %12 = vector.load %arg6[%c0_14, %c0_15] : memref<8x32xf32, #tpu.memory_space<vmem>>, vector<8x32xf32>
    tpu.vector_store %arg6[%c0_14, %c0_15], %11 {strides = array<i32>} : memref<8x32xf32, #tpu.memory_space<vmem>>, vector<8x32xf32>,
    return
  }
  func.func @transform_0(%arg0: i32) -> (i32, i32, i32) {
    %c0_i32 = arith.constant 0 : i32
    %c0_i32_0 = arith.constant 0 : i32
    %c0_i32_1 = arith.constant 0 : i32
    return %c0_i32, %arg0, %c0_i32_0 : i32, i32, i32
  }
  func.func @transform_1(%arg0: i32) -> (i32, i32, i32) {
    %c0_i32 = arith.constant 0 : i32
    %c0_i32_0 = arith.constant 0 : i32
    %c0_i32_1 = arith.constant 0 : i32
    return %c0_i32, %arg0, %c0_i32_0 : i32, i32, i32
  }
  func.func @transform_2(%arg0: i32) -> (i32, i32) {
    %c0_i32 = arith.constant 0 : i32
    %c0_i32_0 = arith.constant 0 : i32
    %c0_i32_1 = arith.constant 0 : i32
    return %c0_i32, %c0_i32_0 : i32, i32
  }
  func.func @transform_3(%arg0: i32) -> (i32, i32) {
    %c0_i32 = arith.constant 0 : i32
    %c0_i32_0 = arith.constant 0 : i32
    %c0_i32_1 = arith.constant 0 : i32
    return %c0_i32, %c0_i32_0 : i32, i32
  }
  func.func @transform_4(%arg0: i32) -> (i32, i32) {
    %c0_i32 = arith.constant 0 : i32
    %c0_i32_0 = arith.constant 0 : i32
    %c0_i32_1 = arith.constant 0 : i32
    return %c0_i32, %c0_i32_0 : i32, i32
  }
  func.func @transform_5(%arg0: i32) -> (i32, i32) {
    %c0_i32 = arith.constant 0 : i32
    %c0_i32_0 = arith.constant 0 : i32
    return %arg0, %c0_i32 : i32, i32
  }
}

</mosaic_0001>

<llo_original>
// kernel: diffpool.1
$region0: #{diffpool.1}
  #allocation0 [shape = 'u32[]', space=smem, size = 0x4, offset = 0x4, fixed_abs, tag = 'smem constant byte address 0x4 - core index']
  #allocation1 [shape = 'u32[144,128]{1,0:T(1,128)}', space=vmem, size = 0x12000, scoped, tag = 'internal scratch']
  %s0 = inlined_call_operand.vmem [shape: f32[3,16,32], index: 0, kind: input, shape index: {}]
  %s1 = inlined_call_operand.vmem [shape: f32[3,16,32], index: 1, kind: input, shape index: {}]
  %s2 = inlined_call_operand.vmem [shape: f32[32,32], index: 2, kind: input, shape index: {}]
  %s3 = inlined_call_operand.vmem [shape: f32[32,32], index: 3, kind: input, shape index: {}]
  %s4 = inlined_call_operand.vmem [shape: f32[1,32], index: 4, kind: input, shape index: {}]
  %s5 = inlined_call_operand.hbm [shape: f32[16,32], index: 5, kind: output, shape index: {}]
  %s6 = sld [smem:[#allocation0]]
  $region129: #{diffpool.1} parent=0
    _
  %s8 = ssub.s32 1, %s6
  %s9 = scalar_select 0, %s8, %s6
  $region1: #{diffpool.1} parent=0
    #allocation2 [shape = 'u8[24576]{0}', space=vmem, size = 0x6000, scoped, tag = 'input window, operand 0']
    #allocation3 [shape = 'u8[24576]{0}', space=vmem, size = 0x6000, scoped, tag = 'input window, operand 1']
    #allocation4 [shape = 'u8[8192]{0}', space=vmem, size = 0x2000, scoped, tag = 'output window, operand 0']
    #allocation5 [shape = 's32[2]{0}', space=sflag, size = 0x8, scoped, tag = 'scoped memory for diffpool.1']
    %10 = vsyncpa [#allocation5], 0
    %s11 = scalar_lea.sflag [#allocation5], 1
    %12 = vsyncpa %s11, 0
    loop: start=0, step=1, limit=4
    $region2: #{diffpool.1} parent=1 // loop_pre_header
      _
    $region3: #{diffpool.1} parent=1 // loop_header
      %s14 = sphi 0, %s18
      %p15 = scmp.ge.s32.totalorder %s14, 4
      %s24 = sphi 0, %s26
      %s27 = sphi 0, %s24
      %s28 = sphi 0, %s27
      %s44 = sphi 0, %s28
      %s50 = sphi 0, %s52
      %s53 = sphi 0, %s50
      %s54 = sphi 0, %s53
      %s70 = sphi 0, %s54
      %s74 = sphi 0, %s74
      %s76 = sphi 0, %s74
      %s77 = sphi 0, %s76
      %s91 = sphi 0, %s77
      %s95 = sphi 0, %s95
      %s97 = sphi 0, %s95
      %s98 = sphi 0, %s97
      %s112 = sphi 0, %s98
      %s116 = sphi 0, %s116
      %s118 = sphi 0, %s116
      %s119 = sphi 0, %s118
      %s133 = sphi 0, %s119
      %s139 = sphi 0, %s141
      %s142 = sphi 0, %s139
      %s143 = sphi 0, %s142
      %s159 = sphi 0, %s143
    $region4: #{diffpool.1} parent=1 // loop_header_branch
      %17 = sbr.rel (%p15) target = $region8
    $region5: #{diffpool.1} parent=1 // loop_body
      %s19 = ssub.s32 %s14, 1
      %s20 = ssub.s32 %s14, 2
      %s21 = sadd.s32 %s14, 1
      %s22 = ssub.s32 %s14, %s21
      %p23 = scmp.eq.s32.totalorder %s22, 0
      %s25 = sadd.s32 %s24, 1
      %s26 = scalar_select %p23, %s24, %s25
      %p29 = pneg %p23
      %p30 = scmp.eq.s32.totalorder %s14, 1
      %p31 = por %p29, %p30
      %p32 = scmp.ne.s32.totalorder %s24, %s27
      %p33 = scmp.eq.s32.totalorder %s14, 0
      %p34 = por %p32, %p33
      %p35 = scmp.ne.s32.totalorder %s24, %s27
      %p36 = scmp.eq.s32.totalorder %s19, 1
      %p37 = por %p35, %p36
      %p38 = scmp.ne.s32.totalorder %s27, %s28
      %p39 = scmp.eq.s32.totalorder %s19, 0
      %p40 = por %p38, %p39
      %p41 = scmp.ne.s32.totalorder %s27, %s28
      %p42 = scmp.eq.s32.totalorder %s20, 1
      %p43 = por %p41, %p42
      %p45 = scmp.ne.s32.totalorder %s28, %s44
      %p46 = scmp.eq.s32.totalorder %s20, 0
      %p47 = por %p45, %p46
      %s48 = ssub.s32 %s14, %s21
      %p49 = scmp.eq.s32.totalorder %s48, 0
      %s51 = sadd.s32 %s50, 1
      %s52 = scalar_select %p49, %s50, %s51
      %p55 = pneg %p49
      %p56 = scmp.eq.s32.totalorder %s14, 1
      %p57 = por %p55, %p56
      %p58 = scmp.ne.s32.totalorder %s50, %s53
      %p59 = scmp.eq.s32.totalorder %s14, 0
      %p60 = por %p58, %p59
      %p61 = scmp.ne.s32.totalorder %s50, %s53
      %p62 = scmp.eq.s32.totalorder %s19, 1
      %p63 = por %p61, %p62
      %p64 = scmp.ne.s32.totalorder %s53, %s54
      %p65 = scmp.eq.s32.totalorder %s19, 0
      %p66 = por %p64, %p65
      %p67 = scmp.ne.s32.totalorder %s53, %s54
      %p68 = scmp.eq.s32.totalorder %s20, 1
      %p69 = por %p67, %p68
      %p71 = scmp.ne.s32.totalorder %s54, %s70
      %p72 = scmp.eq.s32.totalorder %s20, 0
      %p73 = por %p71, %p72
      %s75 = sadd.s32 %s74, 1
      %p78 = scmp.eq.s32.totalorder %s14, 1
      %p79 = scmp.ne.s32.totalorder %s74, %s76
      %p80 = scmp.eq.s32.totalorder %s14, 0
      %p81 = por %p79, %p80
      %p82 = scmp.ne.s32.totalorder %s74, %s76
      %p83 = scmp.eq.s32.totalorder %s19, 1
      %p84 = por %p82, %p83
      %p85 = scmp.ne.s32.totalorder %s76, %s77
      %p86 = scmp.eq.s32.totalorder %s19, 0
      %p87 = por %p85, %p86
      %p88 = scmp.ne.s32.totalorder %s76, %s77
      %p89 = scmp.eq.s32.totalorder %s20, 1
      %p90 = por %p88, %p89
      %p92 = scmp.ne.s32.totalorder %s77, %s91
      %p93 = scmp.eq.s32.totalorder %s20, 0
      %p94 = por %p92, %p93
      %s96 = sadd.s32 %s95, 1
      %p99 = scmp.eq.s32.totalorder %s14, 1
      %p100 = scmp.ne.s32.totalorder %s95, %s97
      %p101 = scmp.eq.s32.totalorder %s14, 0
      %p102 = por %p100, %p101
      %p103 = scmp.ne.s32.totalorder %s95, %s97
      %p104 = scmp.eq.s32.totalorder %s19, 1
      %p105 = por %p103, %p104
      %p106 = scmp.ne.s32.totalorder %s97, %s98
      %p107 = scmp.eq.s32.totalorder %s19, 0
      %p108 = por %p106, %p107
      %p109 = scmp.ne.s32.totalorder %s97, %s98
      %p110 = scmp.eq.s32.totalorder %s20, 1
      %p111 = por %p109, %p110
      %p113 = scmp.ne.s32.totalorder %s98, %s112
      %p114 = scmp.eq.s32.totalorder %s20, 0
      %p115 = por %p113, %p114
      %s117 = sadd.s32 %s116, 1
      %p120 = scmp.eq.s32.totalorder %s14, 1
      %p121 = scmp.ne.s32.totalorder %s116, %s118
      %p122 = scmp.eq.s32.totalorder %s14, 0
      %p123 = por %p121, %p122
      %p124 = scmp.ne.s32.totalorder %s116, %s118
      %p125 = scmp.eq.s32.totalorder %s19, 1
      %p126 = por %p124, %p125
      %p127 = scmp.ne.s32.totalorder %s118, %s119
      %p128 = scmp.eq.s32.totalorder %s19, 0
      %p129 = por %p127, %p128
      %p130 = scmp.ne.s32.totalorder %s118, %s119
      %p131 = scmp.eq.s32.totalorder %s20, 1
      %p132 = por %p130, %p131
      %p134 = scmp.ne.s32.totalorder %s119, %s133
      %p135 = scmp.eq.s32.totalorder %s20, 0
      %p136 = por %p134, %p135
      %s137 = ssub.s32 %s14, %s21
      %p138 = scmp.eq.s32.totalorder %s137, 0
      %s140 = sadd.s32 %s139, 1
      %s141 = scalar_select %p138, %s139, %s140
      %p144 = pneg %p138
      %p145 = scmp.eq.s32.totalorder %s14, 1
      %p146 = por %p144, %p145
      %p147 = scmp.ne.s32.totalorder %s139, %s142
      %p148 = scmp.eq.s32.totalorder %s14, 0
      %p149 = por %p147, %p148
      %p150 = scmp.ne.s32.totalorder %s139, %s142
      %p151 = scmp.eq.s32.totalorder %s19, 1
      %p152 = por %p150, %p151
      %p153 = scmp.ne.s32.totalorder %s142, %s143
      %p154 = scmp.eq.s32.totalorder %s19, 0
      %p155 = por %p153, %p154
      %p156 = scmp.ne.s32.totalorder %s142, %s143
      %p157 = scmp.eq.s32.totalorder %s20, 1
      %p158 = por %p156, %p157
      %p160 = scmp.ne.s32.totalorder %s143, %s159
      %p161 = scmp.eq.s32.totalorder %s20, 0
      %p162 = por %p160, %p161
      %p163 = scmp.le.s32.totalorder 1, %s14
      %p164 = scmp.lt.s32.totalorder %s14, 3
      %p165 = pnand %p163, %p164
      %p166 = pneg %p165
      // Predicated region
      $region9: #{diffpool.1} parent=5 // pred_check
        _
      $region10: #{diffpool.1} parent=5 // pred_check_branch
        %168 = sbr.rel (%p165) target = $region12
      $region11: #{diffpool.1} parent=5 // pred_region
        %s169 = ssub.s32 %s14, 1
        // Predicated region
        $region13: #{diffpool.1} parent=11 // pred_check
          %p170 = pneg %p87
        $region14: #{diffpool.1} parent=11 // pred_check_branch
          %172 = sbr.rel (%p170) target = $region16
        $region15: #{diffpool.1} parent=11 // pred_region
          _
        $region16: #{diffpool.1} parent=11 // pred_fallthru
          _
        // Predicated region
        $region17: #{diffpool.1} parent=11 // pred_check
          %p173 = pneg %p108
        $region18: #{diffpool.1} parent=11 // pred_check_branch
          %175 = sbr.rel (%p173) target = $region20
        $region19: #{diffpool.1} parent=11 // pred_region
          _
        $region20: #{diffpool.1} parent=11 // pred_fallthru
          _
        // Predicated region
        $region21: #{diffpool.1} parent=11 // pred_check
          %p176 = pneg %p129
        $region22: #{diffpool.1} parent=11 // pred_check_branch
          %178 = sbr.rel (%p176) target = $region24
        $region23: #{diffpool.1} parent=11 // pred_region
          _
        $region24: #{diffpool.1} parent=11 // pred_fallthru
          _
      $region12: #{diffpool.1} parent=5 // pred_fallthru
        _
      %p179 = scmp.lt.s32.totalorder %s14, 2
      // Predicated region
      $region25: #{diffpool.1} parent=5 // pred_check
        %p180 = pneg %p179
      $region26: #{diffpool.1} parent=5 // pred_check_branch
        %182 = sbr.rel (%p180) target = $region28
      $region27: #{diffpool.1} parent=5 // pred_region
        // Predicated region
        $region29: #{diffpool.1} parent=27 // pred_check
          %p183 = pneg %p34
        $region30: #{diffpool.1} parent=27 // pred_check_branch
          %185 = sbr.rel (%p183) target = $region32
        $region31: #{diffpool.1} parent=27 // pred_region
          %s186 = sand.u32 %s24, 1
          %s187 = sand.u32 %s24, 1
          %s188 = smul.addr %s187, 24
          %s189 = scalar_lea.vmem [#allocation2], %s188
          %s190 = smul.addr %s14, 8
          %s191 = scalar_lea.vmem %s0, %s190
          // Predicated region
          $region33: #{diffpool.1} parent=31 // pred_check
            _
          $region34: #{diffpool.1} parent=31 // pred_check_branch
            %193 = sbr.rel (0) target = $region36
          $region35: #{diffpool.1} parent=31 // pred_region
            // Predicated region
            $region37: #{diffpool.1} parent=35 // pred_check
              _
            $region38: #{diffpool.1} parent=35 // pred_check_branch
              %195 = sbr.rel (0) target = $region40
            $region39: #{diffpool.1} parent=35 // pred_region
              // Predicated region
              $region52: #{diffpool.1} parent=39 // pred_check
                _
              $region53: #{diffpool.1} parent=39 // pred_check_branch
                %214 = sbr.rel (0) target = $region55
              $region54: #{diffpool.1} parent=39 // pred_region
                loop: start=0, step=1, limit=1
                $region56: #{diffpool.1} parent=54 // loop_pre_header
                  _
                $region57: #{diffpool.1} parent=54 // loop_header
                  %s216 = sphi 0, %s220
                  %p217 = scmp.ge.s32.totalorder %s216, 1
                  %s221 = sphi %s191, %s191
                  %s222 = sphi %s189, %s189
                $region58: #{diffpool.1} parent=54 // loop_header_branch
                  %219 = sbr.rel (%p217) target = $region62
                $region59: #{diffpool.1} parent=54 // loop_body
                  %v223 = vld [vmem:[%s221] sm:$0xff]
                  %224 = vst [vmem:[%s222] sm:$0xff] %v223
                  %v225 = vld [vmem:[%s221 + $0x10] sm:$0xff]
                  %226 = vst [vmem:[%s222 + $0x8] sm:$0xff] %v225
                  %v227 = vld [vmem:[%s221 + $0x20] sm:$0xff]
                  %228 = vst [vmem:[%s222 + $0x10] sm:$0xff] %v227
                $region60: #{diffpool.1} parent=54 // loop_footer
                  %s220 = sadd.s32 1, %s216
                $region61: #{diffpool.1} parent=54 // loop_footer_branch
                  %215 = sbr.rel target = $region57
                $region62: #{diffpool.1} parent=54 // loop_exit
                  _
              $region55: #{diffpool.1} parent=39 // pred_fallthru
                _
              // Predicated region
              $region63: #{diffpool.1} parent=39 // pred_check
                _
              $region64: #{diffpool.1} parent=39 // pred_check_branch
                %230 = sbr.rel target = $region66
              $region65: #{diffpool.1} parent=39 // pred_region
                _
              $region66: #{diffpool.1} parent=39 // pred_fallthru
                _
            $region40: #{diffpool.1} parent=35 // pred_fallthru
              _
            // Predicated region
            $region41: #{diffpool.1} parent=35 // pred_check
              _
            $region42: #{diffpool.1} parent=35 // pred_check_branch
              %197 = sbr.rel target = $region44
            $region43: #{diffpool.1} parent=35 // pred_region
              loop: start=0, step=1, limit=1
              $region45: #{diffpool.1} parent=43 // loop_pre_header
                _
              $region46: #{diffpool.1} parent=43 // loop_header
                %s200 = sphi 0, %s204
                %p201 = scmp.ge.s32.totalorder %s200, 1
                %s205 = sphi %s191, %s191
                %s206 = sphi %s189, %s189
              $region47: #{diffpool.1} parent=43 // loop_header_branch
                %203 = sbr.rel (%p201) target = $region51
              $region48: #{diffpool.1} parent=43 // loop_body
                %v207 = vld [vmem:[%s205] sm:$0xff]
                %208 = vst [vmem:[%s206] sm:$0xff] %v207
                %v209 = vld [vmem:[%s205 + $0x10] sm:$0xff]
                %210 = vst [vmem:[%s206 + $0x8] sm:$0xff] %v209
                %v211 = vld [vmem:[%s205 + $0x20] sm:$0xff]
                %212 = vst [vmem:[%s206 + $0x10] sm:$0xff] %v211
              $region49: #{diffpool.1} parent=43 // loop_footer
                %s204 = sadd.s32 1, %s200
              $region50: #{diffpool.1} parent=43 // loop_footer_branch
                %199 = sbr.rel target = $region46
              $region51: #{diffpool.1} parent=43 // loop_exit
                _
            $region44: #{diffpool.1} parent=35 // pred_fallthru
              _
          $region36: #{diffpool.1} parent=31 // pred_fallthru
            _
          %231 = vnop
        $region32: #{diffpool.1} parent=27 // pred_fallthru
          _
        // Predicated region
        $region67: #{diffpool.1} parent=27 // pred_check
          %p232 = pneg %p60
        $region68: #{diffpool.1} parent=27 // pred_check_branch
          %234 = sbr.rel (%p232) target = $region70
        $region69: #{diffpool.1} parent=27 // pred_region
          %s235 = sand.u32 %s50, 1
          %s236 = sand.u32 %s50, 1
          %s237 = smul.addr %s236, 24
          %s238 = scalar_lea.vmem [#allocation3], %s237
          %s239 = smul.addr %s14, 8
          %s240 = scalar_lea.vmem %s1, %s239
          // Predicated region
          $region71: #{diffpool.1} parent=69 // pred_check
            _
          $region72: #{diffpool.1} parent=69 // pred_check_branch
            %242 = sbr.rel (0) target = $region74
          $region73: #{diffpool.1} parent=69 // pred_region
            // Predicated region
            $region75: #{diffpool.1} parent=73 // pred_check
              _
            $region76: #{diffpool.1} parent=73 // pred_check_branch
              %244 = sbr.rel (0) target = $region78
            $region77: #{diffpool.1} parent=73 // pred_region
              // Predicated region
              $region90: #{diffpool.1} parent=77 // pred_check
                _
              $region91: #{diffpool.1} parent=77 // pred_check_branch
                %263 = sbr.rel (0) target = $region93
              $region92: #{diffpool.1} parent=77 // pred_region
                loop: start=0, step=1, limit=1
                $region94: #{diffpool.1} parent=92 // loop_pre_header
                  _
                $region95: #{diffpool.1} parent=92 // loop_header
                  %s265 = sphi 0, %s269
                  %p266 = scmp.ge.s32.totalorder %s265, 1
                  %s270 = sphi %s240, %s240
                  %s271 = sphi %s238, %s238
                $region96: #{diffpool.1} parent=92 // loop_header_branch
                  %268 = sbr.rel (%p266) target = $region100
                $region97: #{diffpool.1} parent=92 // loop_body
                  %v272 = vld [vmem:[%s270] sm:$0xff]
                  %273 = vst [vmem:[%s271] sm:$0xff] %v272
                  %v274 = vld [vmem:[%s270 + $0x10] sm:$0xff]
                  %275 = vst [vmem:[%s271 + $0x8] sm:$0xff] %v274
                  %v276 = vld [vmem:[%s270 + $0x20] sm:$0xff]
                  %277 = vst [vmem:[%s271 + $0x10] sm:$0xff] %v276
                $region98: #{diffpool.1} parent=92 // loop_footer
                  %s269 = sadd.s32 1, %s265
                $region99: #{diffpool.1} parent=92 // loop_footer_branch
                  %264 = sbr.rel target = $region95
                $region100: #{diffpool.1} parent=92 // loop_exit
                  _
              $region93: #{diffpool.1} parent=77 // pred_fallthru
                _
              // Predicated region
              $region101: #{diffpool.1} parent=77 // pred_check
                _
              $region102: #{diffpool.1} parent=77 // pred_check_branch
                %279 = sbr.rel target = $region104
              $region103: #{diffpool.1} parent=77 // pred_region
                _
              $region104: #{diffpool.1} parent=77 // pred_fallthru
                _
            $region78: #{diffpool.1} parent=73 // pred_fallthru
              _
            // Predicated region
            $region79: #{diffpool.1} parent=73 // pred_check
              _
            $region80: #{diffpool.1} parent=73 // pred_check_branch
              %246 = sbr.rel target = $region82
            $region81: #{diffpool.1} parent=73 // pred_region
              loop: start=0, step=1, limit=1
              $region83: #{diffpool.1} parent=81 // loop_pre_header
                _
              $region84: #{diffpool.1} parent=81 // loop_header
                %s249 = sphi 0, %s253
                %p250 = scmp.ge.s32.totalorder %s249, 1
                %s254 = sphi %s240, %s240
                %s255 = sphi %s238, %s238
              $region85: #{diffpool.1} parent=81 // loop_header_branch
                %252 = sbr.rel (%p250) target = $region89
              $region86: #{diffpool.1} parent=81 // loop_body
                %v256 = vld [vmem:[%s254] sm:$0xff]
                %257 = vst [vmem:[%s255] sm:$0xff] %v256
                %v258 = vld [vmem:[%s254 + $0x10] sm:$0xff]
                %259 = vst [vmem:[%s255 + $0x8] sm:$0xff] %v258
                %v260 = vld [vmem:[%s254 + $0x20] sm:$0xff]
                %261 = vst [vmem:[%s255 + $0x10] sm:$0xff] %v260
              $region87: #{diffpool.1} parent=81 // loop_footer
                %s253 = sadd.s32 1, %s249
              $region88: #{diffpool.1} parent=81 // loop_footer_branch
                %248 = sbr.rel target = $region84
              $region89: #{diffpool.1} parent=81 // loop_exit
                _
            $region82: #{diffpool.1} parent=73 // pred_fallthru
              _
          $region74: #{diffpool.1} parent=69 // pred_fallthru
            _
          %280 = vnop
        $region70: #{diffpool.1} parent=27 // pred_fallthru
          _
      $region28: #{diffpool.1} parent=5 // pred_fallthru
        _
      %p281 = scmp.le.s32.totalorder 1, %s14
      %p282 = scmp.lt.s32.totalorder %s14, 3
      %p283 = pnand %p281, %p282
      %p284 = pneg %p283
      // Predicated region
      $region105: #{diffpool.1} parent=5 // pred_check
        _
      $region106: #{diffpool.1} parent=5 // pred_check_branch
        %286 = sbr.rel (%p283) target = $region108
      $region107: #{diffpool.1} parent=5 // pred_region
        %s287 = ssub.s32 %s14, 1
        %s288 = sand.u32 %s27, 1
        %s289 = sand.u32 %s27, 1
        %s290 = smul.addr %s289, 24
        %s291 = scalar_lea.vmem [#allocation2], %s290
        // Predicated region
        $region109: #{diffpool.1} parent=107 // pred_check
          %p292 = pneg %p40
        $region110: #{diffpool.1} parent=107 // pred_check_branch
          %294 = sbr.rel (%p292) target = $region112
        $region111: #{diffpool.1} parent=107 // pred_region
          _
        $region112: #{diffpool.1} parent=107 // pred_fallthru
          _
        %s295 = sand.u32 %s53, 1
        %s296 = sand.u32 %s53, 1
        %s297 = smul.addr %s296, 24
        %s298 = scalar_lea.vmem [#allocation3], %s297
        // Predicated region
        $region113: #{diffpool.1} parent=107 // pred_check
          %p299 = pneg %p66
        $region114: #{diffpool.1} parent=107 // pred_check_branch
          %301 = sbr.rel (%p299) target = $region116
        $region115: #{diffpool.1} parent=107 // pred_region
          _
        $region116: #{diffpool.1} parent=107 // pred_fallthru
          _
        %s302 = sand.u32 %s27, 1
        %s303 = sand.u32 %s27, 1
        %s304 = smul.addr %s303, 24
        %s305 = scalar_lea.vmem [#allocation2], %s304
        %p306 = pneg %p40
        %p307 = pneg %p37
        %s308 = sand.u32 %s53, 1
        %s309 = sand.u32 %s53, 1
        %s310 = smul.addr %s309, 24
        %s311 = scalar_lea.vmem [#allocation3], %s310
        %p312 = pneg %p66
        %p313 = pneg %p63
        %p314 = pneg %p87
        %p315 = pneg %p84
        %p316 = pneg %p108
        %p317 = pneg %p105
        %p318 = pneg %p129
        %p319 = pneg %p126
        %p320 = pneg %p155
        %p321 = pneg %p152
        %s322 = sand.u32 %s142, 1
        %s323 = scalar_lea.sflag [#allocation5], %s322
        %s324 = sand.u32 %s142, 1
        %s325 = smul.addr %s324, 8
        %s326 = scalar_lea.vmem [#allocation4], %s325
        %v327 = vld [vmem:[%s291] sm:$0xff]
        %v328 = vld [vmem:[%s291 + $0x8] sm:$0xff]
        %v329 = vld [vmem:[%s291 + $0x10] sm:$0xff]
        %vm330 = vcmask 261120
        %v331 = vsel %vm330, %v327, 0.0
        %v332 = vsel %vm330, %v328, 0.0
        %v333 = vadd.f32 %v331, %v332
        %v334 = vsel %vm330, %v329, 0.0
        %v335 = vadd.f32 %v333, %v334
        %v336 = vld [vmem:[%s298] sm:$0xff]
        %v337 = vld [vmem:[%s298 + $0x8] sm:$0xff]
        %v338 = vld [vmem:[%s298 + $0x10] sm:$0xff]
        %v339 = vsel %vm330, %v336, 0.0
        %v340 = vsel %vm330, %v337, 0.0
        %v341 = vadd.f32 %v339, %v340
        %v342 = vsel %vm330, %v338, 0.0
        %v343 = vadd.f32 %v341, %v342
        %v344 = vld [vmem:[%s2] sm:$0xff]
        %v345 = vld [vmem:[%s2 + $0x8] sm:$0xff]
        %v346 = vld [vmem:[%s2 + $0x10] sm:$0xff]
        %v347 = vld [vmem:[%s2 + $0x18] sm:$0xff]
        %v348 = vld [vmem:[%s3] sm:$0xff]
        %v349 = vld [vmem:[%s3 + $0x8] sm:$0xff]
        %v350 = vld [vmem:[%s3 + $0x10] sm:$0xff]
        %v351 = vld [vmem:[%s3 + $0x18] sm:$0xff]
        %v353 = vsel %vm330, %v343, 0
        %355 = vmatprep.subr.mxu0 0.0
        %356 = vmatpush1.msra.mxu0 %v348
        %357 = vmatprep.subr.mxu0 0.0
        %358 = vmatpush1.msra.mxu0 %v349
        %359 = vmatprep.subr.mxu0 0.0
        %360 = vmatpush1.msra.mxu0 %v350
        %361 = vmatprep.subr.mxu0 0.0
        %362 = vmatpush1.msra.mxu0 %v351
        %363 = vmatprep.subr.mxu0 0.0
        %364 = vmatpush1.msra.mxu0 0.0
        %365 = vmatprep.subr.mxu0 0.0
        %366 = vmatpush1.msra.mxu0 0.0
        %367 = vmatprep.subr.mxu0 0.0
        %368 = vmatpush1.msra.mxu0 0.0
        %369 = vmatprep.subr.mxu0 0.0
        %370 = vmatpush1.msra.mxu0 0.0
        %371 = vmatprep.subr.mxu0 0.0
        %372 = vmatpush1.msra.mxu0 0.0
        %373 = vmatprep.subr.mxu0 0.0
        %374 = vmatpush1.msra.mxu0 0.0
        %375 = vmatprep.subr.mxu0 0.0
        %376 = vmatpush1.msra.mxu0 0.0
        %377 = vmatprep.subr.mxu0 0.0
        %378 = vmatpush1.msra.mxu0 0.0
        %379 = vmatprep.subr.mxu0 0.0
        %380 = vmatpush1.msra.mxu0 0.0
        %381 = vmatprep.subr.mxu0 0.0
        %382 = vmatpush1.msra.mxu0 0.0
        %383 = vmatprep.subr.mxu0 0.0
        %384 = vmatpush1.msra.mxu0 0.0
        %385 = vmatprep.subr.mxu0 0.0
        %386 = vmatpush1.msra.mxu0 0.0
        %387 = vmatprep.subr.mxu0 0.0
        %388 = vmatpush1.msra.mxu0 0.0
        %389 = vmatprep.subr.mxu0 0.0
        %390 = vmatpush1.msra.mxu0 0.0
        %391 = vmatprep.subr.mxu0 0.0
        %392 = vmatpush1.msra.mxu0 0.0
        %393 = vmatprep.subr.mxu0 0.0
        %394 = vmatpush1.msra.mxu0 0.0
        %395 = vmatprep.subr.mxu0 0.0
        %396 = vmatpush1.msra.mxu0 0.0
        %397 = vmatprep.subr.mxu0 0.0
        %398 = vmatpush1.msra.mxu0 0.0
        %399 = vmatprep.subr.mxu0 0.0
        %400 = vmatpush1.msra.mxu0 0.0
        %401 = vmatprep.subr.mxu0 0.0
        %402 = vmatpush1.msra.mxu0 0.0
        %403 = vmatprep.subr.mxu0 0.0
        %404 = vmatpush1.msra.mxu0 0.0
        %405 = vmatprep.subr.mxu0 0.0
        %406 = vmatpush1.msra.mxu0 0.0
        %407 = vmatprep.subr.mxu0 0.0
        %408 = vmatpush1.msra.mxu0 0.0
        %409 = vmatprep.subr.mxu0 0.0
        %410 = vmatpush1.msra.mxu0 0.0
        %411 = vmatprep.subr.mxu0 0.0
        %412 = vmatpush1.msra.mxu0 0.0
        %413 = vmatprep.subr.mxu0 0.0
        %414 = vmatpush1.msra.mxu0 0.0
        %415 = vmatprep.subr.mxu0 0.0
        %416 = vmatpush1.msra.mxu0 0.0
        %417 = vmatprep.subr.mxu0 0.0
        %418 = vmatpush1.msra.mxu0 0.0
        %419 = vmatprep.mubr.f32.mxu0 0.0
        %420 = vmatmul.mubr.f32.gmra.mrb[0].mxu0 %v353
        %v421 = vpop.f32.mrb[0].mxu0
        %v422 = vadd.f32 0.0, %v421
        %v423 = vpop.f32.mrb[0].mxu0
        %424 = vdwg.mxu0
        %v426 = vsel %vm330, %v335, 0
        %428 = vmatprep.subr.mxu0 0.0
        %429 = vmatpush1.msra.mxu0 %v344
        %430 = vmatprep.subr.mxu0 0.0
        %431 = vmatpush1.msra.mxu0 %v345
        %432 = vmatprep.subr.mxu0 0.0
        %433 = vmatpush1.msra.mxu0 %v346
        %434 = vmatprep.subr.mxu0 0.0
        %435 = vmatpush1.msra.mxu0 %v347
        %436 = vmatprep.subr.mxu0 0.0
        %437 = vmatpush1.msra.mxu0 0.0
        %438 = vmatprep.subr.mxu0 0.0
        %439 = vmatpush1.msra.mxu0 0.0
        %440 = vmatprep.subr.mxu0 0.0
        %441 = vmatpush1.msra.mxu0 0.0
        %442 = vmatprep.subr.mxu0 0.0
        %443 = vmatpush1.msra.mxu0 0.0
        %444 = vmatprep.subr.mxu0 0.0
        %445 = vmatpush1.msra.mxu0 0.0
        %446 = vmatprep.subr.mxu0 0.0
        %447 = vmatpush1.msra.mxu0 0.0
        %448 = vmatprep.subr.mxu0 0.0
        %449 = vmatpush1.msra.mxu0 0.0
        %450 = vmatprep.subr.mxu0 0.0
        %451 = vmatpush1.msra.mxu0 0.0
        %452 = vmatprep.subr.mxu0 0.0
        %453 = vmatpush1.msra.mxu0 0.0
        %454 = vmatprep.subr.mxu0 0.0
        %455 = vmatpush1.msra.mxu0 0.0
        %456 = vmatprep.subr.mxu0 0.0
        %457 = vmatpush1.msra.mxu0 0.0
        %458 = vmatprep.subr.mxu0 0.0
        %459 = vmatpush1.msra.mxu0 0.0
        %460 = vmatprep.subr.mxu0 0.0
        %461 = vmatpush1.msra.mxu0 0.0
        %462 = vmatprep.subr.mxu0 0.0
        %463 = vmatpush1.msra.mxu0 0.0
        %464 = vmatprep.subr.mxu0 0.0
        %465 = vmatpush1.msra.mxu0 0.0
        %466 = vmatprep.subr.mxu0 0.0
        %467 = vmatpush1.msra.mxu0 0.0
        %468 = vmatprep.subr.mxu0 0.0
        %469 = vmatpush1.msra.mxu0 0.0
        %470 = vmatprep.subr.mxu0 0.0
        %471 = vmatpush1.msra.mxu0 0.0
        %472 = vmatprep.subr.mxu0 0.0
        %473 = vmatpush1.msra.mxu0 0.0
        %474 = vmatprep.subr.mxu0 0.0
        %475 = vmatpush1.msra.mxu0 0.0
        %476 = vmatprep.subr.mxu0 0.0
        %477 = vmatpush1.msra.mxu0 0.0
        %478 = vmatprep.subr.mxu0 0.0
        %479 = vmatpush1.msra.mxu0 0.0
        %480 = vmatprep.subr.mxu0 0.0
        %481 = vmatpush1.msra.mxu0 0.0
        %482 = vmatprep.subr.mxu0 0.0
        %483 = vmatpush1.msra.mxu0 0.0
        %484 = vmatprep.subr.mxu0 0.0
        %485 = vmatpush1.msra.mxu0 0.0
        %486 = vmatprep.subr.mxu0 0.0
        %487 = vmatpush1.msra.mxu0 0.0
        %488 = vmatprep.subr.mxu0 0.0
        %489 = vmatpush1.msra.mxu0 0.0
        %490 = vmatprep.subr.mxu0 0.0
        %491 = vmatpush1.msra.mxu0 0.0
        %492 = vmatprep.mubr.f32.mxu0 0.0
        %493 = vmatmul.mubr.f32.gmra.mrb[0].mxu0 %v426
        %v494 = vpop.f32.mrb[0].mxu0
        %v495 = vadd.f32 %v422, %v494
        %v496 = vpop.f32.mrb[0].mxu0
        %497 = vdwg.mxu0
        %v498 = vld [vmem:[%s4] sm:$0x1]
        %v500 = vlaneseq
        %v501 = vshrl.u32 %v500, 7
        %v502 = vsub.s32 0, %v501
        %v503 = vrot.slane %v498, %v502
        %v505 = vadd.f32 %v495, %v503
        %506 = vst.msk [vmem:[%s326] sm:$0xff] %vm330, %v505
        %s507 = sand.u32 %s142, 1
        %s508 = scalar_lea.sflag [#allocation5], %s507
        %s509 = sand.u32 %s142, 1
        %s510 = smul.addr %s509, 8
        %s511 = scalar_lea.vmem [#allocation4], %s510
        // Predicated region
        $region117: #{diffpool.1} parent=107 // pred_check
          %p512 = pneg %p152
        $region118: #{diffpool.1} parent=107 // pred_check_branch
          %514 = sbr.rel (%p512) target = $region120
        $region119: #{diffpool.1} parent=107 // pred_region
          %s516 = ssub.s32 128, 128
          %517 = vsyncadd %s508, %s516
          %s518 = smul.addr %s19, 128
          %s519 = scalar_lea.hbm %s5, %s518
          %s521 = sshll.u32 %s511, 4
          %s522 = int_to_ptr.vmem [resolvable:$true] %s521
          %524 = dma.vmem_to_hbm [thread:$0]  %s522, 128, %s519, %s508
        $region120: #{diffpool.1} parent=107 // pred_fallthru
          _
      $region108: #{diffpool.1} parent=5 // pred_fallthru
        _
      %p525 = scmp.le.s32.totalorder 2, %s14
      // Predicated region
      $region121: #{diffpool.1} parent=5 // pred_check
        %p526 = pneg %p525
      $region122: #{diffpool.1} parent=5 // pred_check_branch
        %528 = sbr.rel (%p526) target = $region124
      $region123: #{diffpool.1} parent=5 // pred_region
        %s529 = ssub.s32 %s14, 2
        // Predicated region
        $region125: #{diffpool.1} parent=123 // pred_check
          %p530 = pneg %p158
        $region126: #{diffpool.1} parent=123 // pred_check_branch
          %532 = sbr.rel (%p530) target = $region128
        $region127: #{diffpool.1} parent=123 // pred_region
          %s533 = sand.u32 %s143, 1
          %s534 = scalar_lea.sflag [#allocation5], %s533
          %s535 = sand.u32 %s143, 1
          %s536 = smul.addr %s535, 8
          %s537 = scalar_lea.vmem [#allocation4], %s536
          %538 = dma.done %s534, 128
        $region128: #{diffpool.1} parent=123 // pred_fallthru
          _
      $region124: #{diffpool.1} parent=5 // pred_fallthru
        _
    $region6: #{diffpool.1} parent=1 // loop_footer
      %s18 = sadd.s32 1, %s14
    $region7: #{diffpool.1} parent=1 // loop_footer_branch
      %13 = sbr.rel target = $region3
    $region8: #{diffpool.1} parent=1 // loop_exit
      _
    %539 = vsyncpa [#allocation5], 1
    %s540 = scalar_lea.sflag [#allocation5], 1
    %541 = vsyncpa %s540, 1

</llo_original>
